<compile_context>
chip_gen: v5e
topology: v5e:2x2
jax: 0.10.0
libtpu: 0.0.40
codegen_flags: <defaults>
</compile_context>

<pallas_src>
import jax
import jax.numpy as jnp
from jax.experimental import pallas as pl
from jax.experimental.pallas import tpu as pltpu


def _round_up(x, m):
    return ((x + m - 1) // m) * m


def autoencoder_kernel(x_ref, w1_ref, b1_ref, w2_ref, b2_ref, out_ref):
    # hidden = sigmoid(x @ W1 + b1): cast x to the (bf16) compute dtype in VMEM, run the
    # MXU matmul with f32 accumulation, bias add + sigmoid in f32 (sigmoid uses the EUP).
    x = x_ref[...].astype(w1_ref.dtype)
    h = jnp.dot(x, w1_ref[...], preferred_element_type=jnp.float32)
    h = jax.nn.sigmoid(h + b1_ref[...])
    # out = hidden @ W2 + b2 (no activation on the output, matching the module).
    o = jnp.dot(h.astype(w2_ref.dtype), w2_ref[...],
                preferred_element_type=jnp.float32)
    out_ref[...] = (o + b2_ref[...]).astype(out_ref.dtype)


def _vmem_budget_bytes():
    """Generation-aware VMEM budget: physical capacity minus headroom."""
    cap = 64 << 20                       # conservative (v7x-sized) fallback
    try:
        info = pltpu.get_tpu_info()
        cap = int(getattr(info, "vmem_capacity_bytes", cap) or cap)
    except Exception:
        pass
    # v5e/v6e (128 MiB) -> ~112 MiB usable; v7x (64 MiB) -> ~48 MiB usable.
    return max(min(cap - (16 << 20), 112 << 20), 24 << 20)


def _choose_batch_tile(B, per_row_bytes, resident_bytes, budget, block_batch):
    """Largest batch tile (multiple of 8) whose pipelined footprint fits the budget."""
    TB = _round_up(min(block_batch, _round_up(B, 8)), 8)
    # >= 2 grid steps when the batch is large so v7x's two TensorCores both get work
    # under dimension_semantics=("parallel",); harmless on single-TC v5e/v6e.
    if B >= 512:
        TB = min(TB, _round_up(pl.cdiv(B, 2), 8))
    # A 256-multiple M dimension fills the 2x256^2 MXU on v6e/v7x.
    if TB >= 256:
        TB = (TB // 256) * 256

    def est(tb):
        # x / out tiles are double-buffered by the pipeline; resident ops counted separately.
        return resident_bytes + 2 * tb * per_row_bytes

    while TB > 8 and est(TB) > budget:
        TB = max(8, _round_up(TB // 2, 8))
    return TB, est(TB)


def autoencoder_forward(x, w1, b1, w2, b2, *, block_batch=512,
                        compute_dtype=jnp.bfloat16, out_dtype=None):
    """x: (B, n_feature); w1: (n_feature, n_hidden); b1: (1, n_hidden) or (n_hidden,);
       w2: (n_hidden, n_feature); b2: (1, n_feature) or (n_feature,)."""
    B, n_feature = x.shape
    n_hidden = w1.shape[1]
    out_dtype = x.dtype if out_dtype is None else out_dtype

    # Weights/biases are tiny relative to x: one cheap host-side cast, then VMEM-resident
    # inside the kernel. x itself is passed through untouched (cast happens in-kernel).
    w1c = w1.astype(compute_dtype)
    w2c = w2.astype(compute_dtype)
    b1f = b1.reshape(1, n_hidden).astype(jnp.float32)
    b2f = b2.reshape(1, n_feature).astype(jnp.float32)

    cbytes = jnp.dtype(compute_dtype).itemsize
    xbytes = jnp.dtype(x.dtype).itemsize
    obytes = jnp.dtype(out_dtype).itemsize
    budget = _vmem_budget_bytes()
    per_row_bytes = n_feature * (xbytes + obytes)

    cost = pl.CostEstimate(
        flops=4 * B * n_feature * n_hidden,          # two matmuls, 2*M*K*N each
        transcendentals=B * n_hidden,                # sigmoid
        bytes_accessed=int(B * per_row_bytes
                           + 2 * n_feature * n_hidden * cbytes
                           + (n_feature + n_hidden) * 4),
    )

    # NOTE: for very large n_feature/n_hidden (resident weights approaching the VMEM
    # budget, which happens at ~half the width on v7x's 64 MiB VMEM) this should switch
    # to a K-tiled reduction grid with an f32 VMEM accumulator; not needed at these sizes.
    def build(weight_bufs):
        resident_bytes = weight_bufs * (2 * n_feature * n_hidden * cbytes
                                        + (n_feature + n_hidden) * 4)
        TB, est = _choose_batch_tile(B, per_row_bytes, resident_bytes, budget,
                                     block_batch)
        vmem_limit = int(min(max(est + (8 << 20), 32 << 20), budget))

        if weight_bufs == 1:
            def resident(shape):                     # single-buffered resident operand
                return pl.BlockSpec(shape, lambda i: (0, 0),
                                    pipeline_mode=pl.Buffered(1))
        else:
            def resident(shape):
                return pl.BlockSpec(shape, lambda i: (0, 0))

        return pl.pallas_call(
            autoencoder_kernel,
            out_shape=jax.ShapeDtypeStruct((B, n_feature), out_dtype),
            grid=(pl.cdiv(B, TB),),                  # ragged tail -> masked short tile
            in_specs=[
                pl.BlockSpec((TB, n_feature), lambda i: (i, 0)),   # x tile (pipelined)
                resident((n_feature, n_hidden)),                   # W1 (VMEM-resident)
                resident((1, n_hidden)),                           # b1
                resident((n_hidden, n_feature)),                   # W2 (VMEM-resident)
                resident((1, n_feature)),                          # b2
            ],
            out_specs=pl.BlockSpec((TB, n_feature), lambda i: (i, 0)),
            compiler_params=pltpu.CompilerParams(
                dimension_semantics=("parallel",),   # megacore split on v7x
                vmem_limit_bytes=vmem_limit,
            ),
            cost_estimate=cost,
        )

    try:
        # Preferred: weights/biases single-buffered (constant index_map, never re-fetched).
        return build(1)(x, w1c, b1f, w2c, b2f)
    except Exception:
        # Compatibility guard: fall back to default (double) buffering if this runtime
        # rejects pl.Buffered(1) on pipelined operands.
        return build(2)(x, w1c, b1f, w2c, b2f)


def init_params(key, n_feature, n_hidden, dtype=jnp.float32):
    """Deterministic init mimicking nn.Linear's uniform(-1/sqrt(fan_in), 1/sqrt(fan_in))."""
    k1, k2, k3, k4 = jax.random.split(key, 4)
    bound1 = 1.0 / jnp.sqrt(n_feature)
    bound2 = 1.0 / jnp.sqrt(n_hidden)
    w1 = jax.random.uniform(k1, (n_feature, n_hidden), dtype, -bound1, bound1)
    b1 = jax.random.uniform(k2, (1, n_hidden), dtype, -bound1, bound1)
    w2 = jax.random.uniform(k3, (n_hidden, n_feature), dtype, -bound2, bound2)
    b2 = jax.random.uniform(k4, (1, n_feature), dtype, -bound2, bound2)
    return w1, b1, w2, b2


if __name__ == "__main__":
    key = jax.random.PRNGKey(0)
    kx, kp = jax.random.split(key)

    batch = 8
    n_feature = 64
    n_hidden = 32

    x = jax.random.normal(kx, (batch, n_feature), jnp.float32)
    w1, b1, w2, b2 = init_params(kp, n_feature, n_hidden)

    out = jax.block_until_ready(autoencoder_forward(x, w1, b1, w2, b2))

    # Reference check against plain f32 JAX (same semantics as the PyTorch forward).
    # Tolerance sized for bf16 MXU inputs with f32 accumulation.
    ref = jax.nn.sigmoid(x @ w1 + b1) @ w2 + b2
    assert out.shape == (batch, n_feature)
    assert out.dtype == x.dtype
    assert jnp.allclose(out, ref, atol=5e-2, rtol=5e-2), float(
        jnp.max(jnp.abs(out - ref)))

    print("KERNEL_OK")
</pallas_src>

<mosaic_0001>
module attributes {stable_mosaic.version = 11 : i64} {
  func.func @autoencoder_kernel(%arg0: i32, %arg1: memref<8x64xf32, #tpu.memory_space<vmem>>, %arg2: memref<64x32xbf16, #tpu.memory_space<vmem>>, %arg3: memref<1x32xf32, #tpu.memory_space<vmem>>, %arg4: memref<32x64xbf16, #tpu.memory_space<vmem>>, %arg5: memref<1x64xf32, #tpu.memory_space<vmem>>, %arg6: memref<8x64xf32, #tpu.memory_space<vmem>>) attributes {dimension_semantics = [#tpu.dimension_semantics<parallel>], iteration_bounds = array<i64: 1>, scalar_prefetch = 0 : i64, scratch_operands = 0 : i64, tpu.core_type = #tpu.core_type<tc>, window_params = [{transform_indices = @transform_0, window_bounds = array<i64: 8, 64>}, {pipeline_mode = #tpu.pipeline_mode<synchronous>, transform_indices = @transform_1, window_bounds = array<i64: 64, 32>}, {pipeline_mode = #tpu.pipeline_mode<synchronous>, transform_indices = @transform_2, window_bounds = array<i64: 1, 32>}, {pipeline_mode = #tpu.pipeline_mode<synchronous>, transform_indices = @transform_3, window_bounds = array<i64: 32, 64>}, {pipeline_mode = #tpu.pipeline_mode<synchronous>, transform_indices = @transform_4, window_bounds = array<i64: 1, 64>}, {transform_indices = @transform_5, window_bounds = array<i64: 8, 64>}]} {
    %c0 = arith.constant 0 : index
    %c0_0 = arith.constant 0 : index
    %0 = vector.load %arg1[%c0, %c0_0] : memref<8x64xf32, #tpu.memory_space<vmem>>, vector<8x64xf32>
    %1 = arith.truncf %0 : vector<8x64xf32> to vector<8x64xbf16>
    %c0_1 = arith.constant 0 : index
    %c0_2 = arith.constant 0 : index
    %2 = vector.load %arg2[%c0_1, %c0_2] : memref<64x32xbf16, #tpu.memory_space<vmem>>, vector<64x32xbf16>
    %cst = arith.constant dense<0.000000e+00> : vector<8x32xf32>
    %3 = tpu.matmul %1, %2, %cst {dimension_numbers = #tpu.dot_dimension_numbers<[1], [0], [0], [1], [0, 0, 1, 1], [], []>} : vector<8x64xbf16>, vector<64x32xbf16>, vector<8x32xf32> -> vector<8x32xf32>
    %c0_3 = arith.constant 0 : index
    %c0_4 = arith.constant 0 : index
    %4 = vector.load %arg3[%c0_3, %c0_4] : memref<1x32xf32, #tpu.memory_space<vmem>>, vector<1x32xf32>
    %5 = vector.broadcast %4 : vector<1x32xf32> to vector<8x32xf32>
    %6 = arith.addf %3, %5 : vector<8x32xf32>
    %7 = arith.negf %6 : vector<8x32xf32>
    %8 = math.exp %7 : vector<8x32xf32>
    %cst_5 = arith.constant 1.000000e+00 : f32
    %9 = vector.broadcast %cst_5 : f32 to vector<8x32xf32>
    %10 = arith.addf %9, %8 : vector<8x32xf32>
    %11 = arith.divf %9, %10 : vector<8x32xf32>
    %12 = arith.truncf %11 : vector<8x32xf32> to vector<8x32xbf16>
    %c0_6 = arith.constant 0 : index
    %c0_7 = arith.constant 0 : index
    %13 = vector.load %arg4[%c0_6, %c0_7] : memref<32x64xbf16, #tpu.memory_space<vmem>>, vector<32x64xbf16>
    %cst_8 = arith.constant dense<0.000000e+00> : vector<8x64xf32>
    %14 = tpu.matmul %12, %13, %cst_8 {dimension_numbers = #tpu.dot_dimension_numbers<[1], [0], [0], [1], [0, 0, 1, 1], [], []>} : vector<8x32xbf16>, vector<32x64xbf16>, vector<8x64xf32> -> vector<8x64xf32>
    %c0_9 = arith.constant 0 : index
    %c0_10 = arith.constant 0 : index
    %15 = vector.load %arg5[%c0_9, %c0_10] : memref<1x64xf32, #tpu.memory_space<vmem>>, vector<1x64xf32>
    %16 = vector.broadcast %15 : vector<1x64xf32> to vector<8x64xf32>
    %17 = arith.addf %14, %16 : vector<8x64xf32>
    %c0_11 = arith.constant 0 : index
    %c0_12 = arith.constant 0 : index
    %18 = vector.load %arg6[%c0_11, %c0_12] : memref<8x64xf32, #tpu.memory_space<vmem>>, vector<8x64xf32>
    tpu.vector_store %arg6[%c0_11, %c0_12], %17 {strides = array<i32>} : memref<8x64xf32, #tpu.memory_space<vmem>>, vector<8x64xf32>,
    return
  }
  func.func @transform_0(%arg0: i32) -> (i32, i32) {
    %c0_i32 = arith.constant 0 : i32
    %c0_i32_0 = arith.constant 0 : i32
    return %arg0, %c0_i32 : i32, i32
  }
  func.func @transform_1(%arg0: i32) -> (i32, i32) {
    %c0_i32 = arith.constant 0 : i32
    %c0_i32_0 = arith.constant 0 : i32
    %c0_i32_1 = arith.constant 0 : i32
    return %c0_i32, %c0_i32_0 : i32, i32
  }
  func.func @transform_2(%arg0: i32) -> (i32, i32) {
    %c0_i32 = arith.constant 0 : i32
    %c0_i32_0 = arith.constant 0 : i32
    %c0_i32_1 = arith.constant 0 : i32
    return %c0_i32, %c0_i32_0 : i32, i32
  }
  func.func @transform_3(%arg0: i32) -> (i32, i32) {
    %c0_i32 = arith.constant 0 : i32
    %c0_i32_0 = arith.constant 0 : i32
    %c0_i32_1 = arith.constant 0 : i32
    return %c0_i32, %c0_i32_0 : i32, i32
  }
  func.func @transform_4(%arg0: i32) -> (i32, i32) {
    %c0_i32 = arith.constant 0 : i32
    %c0_i32_0 = arith.constant 0 : i32
    %c0_i32_1 = arith.constant 0 : i32
    return %c0_i32, %c0_i32_0 : i32, i32
  }
  func.func @transform_5(%arg0: i32) -> (i32, i32) {
    %c0_i32 = arith.constant 0 : i32
    %c0_i32_0 = arith.constant 0 : i32
    return %arg0, %c0_i32 : i32, i32
  }
}

module attributes {stable_mosaic.version = 11 : i64} {
  func.func @autoencoder_kernel(%arg0: i32, %arg1: memref<8x64xf32, #tpu.memory_space<vmem>>, %arg2: memref<64x32xbf16, #tpu.memory_space<vmem>>, %arg3: memref<1x32xf32, #tpu.memory_space<vmem>>, %arg4: memref<32x64xbf16, #tpu.memory_space<vmem>>, %arg5: memref<1x64xf32, #tpu.memory_space<vmem>>, %arg6: memref<8x64xf32, #tpu.memory_space<vmem>>) attributes {dimension_semantics = [#tpu.dimension_semantics<parallel>], iteration_bounds = array<i64: 1>, scalar_prefetch = 0 : i64, scratch_operands = 0 : i64, tpu.core_type = #tpu.core_type<tc>, window_params = [{transform_indices = @transform_0, window_bounds = array<i64: 8, 64>}, {pipeline_mode = #tpu.pipeline_mode<synchronous>, transform_indices = @transform_1, window_bounds = array<i64: 64, 32>}, {pipeline_mode = #tpu.pipeline_mode<synchronous>, transform_indices = @transform_2, window_bounds = array<i64: 1, 32>}, {pipeline_mode = #tpu.pipeline_mode<synchronous>, transform_indices = @transform_3, window_bounds = array<i64: 32, 64>}, {pipeline_mode = #tpu.pipeline_mode<synchronous>, transform_indices = @transform_4, window_bounds = array<i64: 1, 64>}, {transform_indices = @transform_5, window_bounds = array<i64: 8, 64>}]} {
    %c0 = arith.constant 0 : index
    %c0_0 = arith.constant 0 : index
    %0 = vector.load %arg1[%c0, %c0_0] : memref<8x64xf32, #tpu.memory_space<vmem>>, vector<8x64xf32>
    %1 = arith.truncf %0 : vector<8x64xf32> to vector<8x64xbf16>
    %c0_1 = arith.constant 0 : index
    %c0_2 = arith.constant 0 : index
    %2 = vector.load %arg2[%c0_1, %c0_2] : memref<64x32xbf16, #tpu.memory_space<vmem>>, vector<64x32xbf16>
    %cst = arith.constant dense<0.000000e+00> : vector<8x32xf32>
    %3 = tpu.matmul %1, %2, %cst {dimension_numbers = #tpu.dot_dimension_numbers<[1], [0], [0], [1], [0, 0, 1, 1], [], []>} : vector<8x64xbf16>, vector<64x32xbf16>, vector<8x32xf32> -> vector<8x32xf32>
    %c0_3 = arith.constant 0 : index
    %c0_4 = arith.constant 0 : index
    %4 = vector.load %arg3[%c0_3, %c0_4] : memref<1x32xf32, #tpu.memory_space<vmem>>, vector<1x32xf32>
    %5 = vector.broadcast %4 : vector<1x32xf32> to vector<8x32xf32>
    %6 = arith.addf %3, %5 : vector<8x32xf32>
    %7 = arith.negf %6 : vector<8x32xf32>
    %8 = math.exp %7 : vector<8x32xf32>
    %cst_5 = arith.constant 1.000000e+00 : f32
    %9 = vector.broadcast %cst_5 : f32 to vector<8x32xf32>
    %10 = arith.addf %9, %8 : vector<8x32xf32>
    %11 = arith.divf %9, %10 : vector<8x32xf32>
    %12 = arith.truncf %11 : vector<8x32xf32> to vector<8x32xbf16>
    %c0_6 = arith.constant 0 : index
    %c0_7 = arith.constant 0 : index
    %13 = vector.load %arg4[%c0_6, %c0_7] : memref<32x64xbf16, #tpu.memory_space<vmem>>, vector<32x64xbf16>
    %cst_8 = arith.constant dense<0.000000e+00> : vector<8x64xf32>
    %14 = tpu.matmul %12, %13, %cst_8 {dimension_numbers = #tpu.dot_dimension_numbers<[1], [0], [0], [1], [0, 0, 1, 1], [], []>} : vector<8x32xbf16>, vector<32x64xbf16>, vector<8x64xf32> -> vector<8x64xf32>
    %c0_9 = arith.constant 0 : index
    %c0_10 = arith.constant 0 : index
    %15 = vector.load %arg5[%c0_9, %c0_10] : memref<1x64xf32, #tpu.memory_space<vmem>>, vector<1x64xf32>
    %16 = vector.broadcast %15 : vector<1x64xf32> to vector<8x64xf32>
    %17 = arith.addf %14, %16 : vector<8x64xf32>
    %c0_11 = arith.constant 0 : index
    %c0_12 = arith.constant 0 : index
    %18 = vector.load %arg6[%c0_11, %c0_12] : memref<8x64xf32, #tpu.memory_space<vmem>>, vector<8x64xf32>
    tpu.vector_store %arg6[%c0_11, %c0_12], %17 {strides = array<i32>} : memref<8x64xf32, #tpu.memory_space<vmem>>, vector<8x64xf32>,
    return
  }
  func.func @transform_0(%arg0: i32) -> (i32, i32) {
    %c0_i32 = arith.constant 0 : i32
    %c0_i32_0 = arith.constant 0 : i32
    return %arg0, %c0_i32 : i32, i32
  }
  func.func @transform_1(%arg0: i32) -> (i32, i32) {
    %c0_i32 = arith.constant 0 : i32
    %c0_i32_0 = arith.constant 0 : i32
    %c0_i32_1 = arith.constant 0 : i32
    return %c0_i32, %c0_i32_0 : i32, i32
  }
  func.func @transform_2(%arg0: i32) -> (i32, i32) {
    %c0_i32 = arith.constant 0 : i32
    %c0_i32_0 = arith.constant 0 : i32
    %c0_i32_1 = arith.constant 0 : i32
    return %c0_i32, %c0_i32_0 : i32, i32
  }
  func.func @transform_3(%arg0: i32) -> (i32, i32) {
    %c0_i32 = arith.constant 0 : i32
    %c0_i32_0 = arith.constant 0 : i32
    %c0_i32_1 = arith.constant 0 : i32
    return %c0_i32, %c0_i32_0 : i32, i32
  }
  func.func @transform_4(%arg0: i32) -> (i32, i32) {
    %c0_i32 = arith.constant 0 : i32
    %c0_i32_0 = arith.constant 0 : i32
    %c0_i32_1 = arith.constant 0 : i32
    return %c0_i32, %c0_i32_0 : i32, i32
  }
  func.func @transform_5(%arg0: i32) -> (i32, i32) {
    %c0_i32 = arith.constant 0 : i32
    %c0_i32_0 = arith.constant 0 : i32
    return %arg0, %c0_i32 : i32, i32
  }
}

</mosaic_0001>

<llo_original>
// kernel: tpu_custom_call.1
$region0: #{tpu_custom_call.1}
  #allocation0 [shape = 'u32[]', space=smem, size = 0x4, offset = 0x4, fixed_abs, tag = 'smem constant byte address 0x4 - core index']
  #allocation1 [shape = 'u32[72,128]{1,0:T(1,128)}', space=vmem, size = 0x9000, scoped, tag = 'internal scratch']
  %s0 = inlined_call_operand.vmem [shape: f32[8,64], index: 0, kind: input, shape index: {}]
  %s1 = inlined_call_operand.vmem [shape: bf16[64,32], index: 1, kind: input, shape index: {}]
  %s2 = inlined_call_operand.vmem [shape: f32[1,32], index: 2, kind: input, shape index: {}]
  %s3 = inlined_call_operand.vmem [shape: bf16[32,64], index: 3, kind: input, shape index: {}]
  %s4 = inlined_call_operand.vmem [shape: f32[1,64], index: 4, kind: input, shape index: {}]
  %s5 = inlined_call_operand.hbm [shape: f32[8,64], index: 5, kind: output, shape index: {}]
  %s6 = sld [smem:[#allocation0]]
  $region30: #{tpu_custom_call.1} parent=0
    _
  %s8 = ssub.s32 1, %s6
  %s9 = scalar_select 0, %s8, %s6
  $region1: #{tpu_custom_call.1} parent=0
    #allocation2 [shape = 'u8[4096]{0}', space=vmem, size = 0x1000, scoped, tag = 'output window, operand 0, single buffered']
    #allocation3 [shape = 's32[1]{0}', space=sflag, size = 0x4, scoped, tag = 'scoped memory for tpu_custom_call.1']
    %10 = vsyncpa [#allocation3], 0
    // Predicated region
    $region2: #{tpu_custom_call.1} parent=1 // pred_check
      _
    $region3: #{tpu_custom_call.1} parent=1 // pred_check_branch
      %12 = sbr.rel (0) target = $region5
    $region4: #{tpu_custom_call.1} parent=1 // pred_region
      _
    $region5: #{tpu_custom_call.1} parent=1 // pred_fallthru
      _
    // Predicated region
    $region6: #{tpu_custom_call.1} parent=1 // pred_check
      _
    $region7: #{tpu_custom_call.1} parent=1 // pred_check_branch
      %14 = sbr.rel (0) target = $region9
    $region8: #{tpu_custom_call.1} parent=1 // pred_region
      _
    $region9: #{tpu_custom_call.1} parent=1 // pred_fallthru
      _
    // Predicated region
    $region10: #{tpu_custom_call.1} parent=1 // pred_check
      _
    $region11: #{tpu_custom_call.1} parent=1 // pred_check_branch
      %16 = sbr.rel (0) target = $region13
    $region12: #{tpu_custom_call.1} parent=1 // pred_region
      _
    $region13: #{tpu_custom_call.1} parent=1 // pred_fallthru
      _
    // Predicated region
    $region14: #{tpu_custom_call.1} parent=1 // pred_check
      _
    $region15: #{tpu_custom_call.1} parent=1 // pred_check_branch
      %18 = sbr.rel (0) target = $region17
    $region16: #{tpu_custom_call.1} parent=1 // pred_region
      _
    $region17: #{tpu_custom_call.1} parent=1 // pred_fallthru
      _
    // Predicated region
    $region18: #{tpu_custom_call.1} parent=1 // pred_check
      _
    $region19: #{tpu_custom_call.1} parent=1 // pred_check_branch
      %20 = sbr.rel (0) target = $region21
    $region20: #{tpu_custom_call.1} parent=1 // pred_region
      _
    $region21: #{tpu_custom_call.1} parent=1 // pred_fallthru
      _
    %v22 = vld [vmem:[%s0] sm:$0xff]
    %v23 = vpack.c.bf16 %v22, %v22
    %v24 = vld [vmem:[%s1] sm:$0xf]
    %v25 = vld [vmem:[%s1 + $0x4] sm:$0xf]
    %v26 = vld [vmem:[%s1 + $0x8] sm:$0xf]
    %v27 = vld [vmem:[%s1 + $0xc] sm:$0xf]
    %v28 = vld [vmem:[%s1 + $0x10] sm:$0xf]
    %v29 = vld [vmem:[%s1 + $0x14] sm:$0xf]
    %v30 = vld [vmem:[%s1 + $0x18] sm:$0xf]
    %v31 = vld [vmem:[%s1 + $0x1c] sm:$0xf]
    %v32 = vld [vmem:[%s2] sm:$0x1]
    %v34 = vperm.slane %v32, 0
    %v44 = vunpack.c.l.b16 %v24
    %v45 = vunpack.c.l.b16 %v25
    %v46 = vunpack.c.l.b16 %v26
    %v47 = vunpack.c.l.b16 %v27
    %v48 = vunpack.c.l.b16 %v28
    %v49 = vunpack.c.l.b16 %v29
    %v50 = vunpack.c.l.b16 %v30
    %v51 = vunpack.c.l.b16 %v31
    %v52 = vpack.c.b16 %v45, %v44
    %v53 = vpack.c.b16 %v47, %v46
    %v54 = vpack.c.b16 %v49, %v48
    %v55 = vpack.c.b16 %v51, %v50
    %vm60 = vcmask 523264
    %v62 = vsel %vm60, %v23, 0
    %64 = vmatpush.bf16.msra.mxu0 0
    %65 = vmatpush.bf16.msra.mxu0 0
    %66 = vmatpush.bf16.msra.mxu0 0
    %67 = vmatpush.bf16.msra.mxu0 0
    %68 = vmatpush.bf16.msra.mxu0 %v55
    %69 = vmatpush.bf16.msra.mxu0 %v54
    %70 = vmatpush.bf16.msra.mxu0 %v53
    %71 = vmatpush.bf16.msra.mxu0 %v52
    %72 = vmatmul.bf16.gmra.mxu0 %v62
    %v73 = vpop.f32.mrf.mxu0
    %v74 = vadd.f32 %v34, %v73
    %v75 = vpop.f32.mrf.mxu0
    %76 = vdwg.mxu0
    %v77 = vxor.u32 %v74, 2147483648
    %v78 = vmul.f32 %v77, 1.442695
    %v79 = vpow.pop %v78
    %v80 = vadd.f32 %v79, 1.0
    %v81 = vrcp.pop %v80
    %v82 = vmul.f32 %v80, %v81
    %v83 = vsub.f32 1.0, %v82
    %v84 = vmul.f32 %v81, %v83
    %v85 = vadd.f32 %v81, %v84
    %vm86 = vweird.f32 %v80
    %vm87 = vweird.f32 %v81
    %vm88 = vmor %vm86, %vm87
    %v89 = vsel %vm88, %v81, %v85
    %v90 = vand.u32 2147483647, %v80
    %vm91 = vcmp.eq.f32.partialorder %v90, 8.507059e+37
    %v92 = vand.u32 %v80, 2147483648
    %v93 = vor.u32 1.1754944e-38, %v92
    %v94 = vsel %vm91, %v93, %v89
    %v95 = vmul.f32 1.0, %v94
    %v96 = vpack.c.bf16 %v95, %v95
    %v97 = vld [vmem:[%s3] sm:$0xf]
    %v98 = vld [vmem:[%s3 + $0x4] sm:$0xf]
    %v99 = vld [vmem:[%s3 + $0x8] sm:$0xf]
    %v100 = vld [vmem:[%s3 + $0xc] sm:$0xf]
    %v101 = vld [vmem:[%s4] sm:$0x1]
    %v103 = vperm.slane %v101, 0
    %v109 = vunpack.c.l.b16 %v97
    %v110 = vunpack.c.l.b16 %v98
    %v111 = vunpack.c.l.b16 %v99
    %v112 = vunpack.c.l.b16 %v100
    %v113 = vpack.c.b16 %v110, %v109
    %v114 = vpack.c.b16 %v112, %v111
    %vm117 = vcmask 261120
    %v119 = vsel %vm117, %v96, 0
    %121 = vmatpush.bf16.msra.mxu0 0
    %122 = vmatpush.bf16.msra.mxu0 0
    %123 = vmatpush.bf16.msra.mxu0 0
    %124 = vmatpush.bf16.msra.mxu0 0
    %125 = vmatpush.bf16.msra.mxu0 0
    %126 = vmatpush.bf16.msra.mxu0 0
    %127 = vmatpush.bf16.msra.mxu0 %v114
    %128 = vmatpush.bf16.msra.mxu0 %v113
    %129 = vmatmul.bf16.gmra.mxu0 %v119
    %v130 = vpop.f32.mrf.mxu0
    %v131 = vadd.f32 %v103, %v130
    %v132 = vpop.f32.mrf.mxu0
    %133 = vdwg.mxu0
    %134 = vst.msk [vmem:[#allocation2] sm:$0xff] %vm60, %v131
    // Predicated region
    $region22: #{tpu_custom_call.1} parent=1 // pred_check
      _
    $region23: #{tpu_custom_call.1} parent=1 // pred_check_branch
      %136 = sbr.rel (0) target = $region25
    $region24: #{tpu_custom_call.1} parent=1 // pred_region
      %138 = vsyncadd [#allocation3], 0
      %s140 = sshll.u32 [#allocation2], 4
      %s141 = int_to_ptr.vmem [resolvable:$true] %s140
      %s142 = sshll.u32 %s5, 4
      %s143 = int_to_ptr.hbm [resolvable:$true] %s142
      %145 = dma.vmem_to_hbm [thread:$0]  %s141, 128, %s143, [#allocation3]
    $region25: #{tpu_custom_call.1} parent=1 // pred_fallthru
      _
    // Predicated region
    $region26: #{tpu_custom_call.1} parent=1 // pred_check
      _
    $region27: #{tpu_custom_call.1} parent=1 // pred_check_branch
      %147 = sbr.rel (0) target = $region29
    $region28: #{tpu_custom_call.1} parent=1 // pred_region
      %149 = dma.done [#allocation3], 128
    $region29: #{tpu_custom_call.1} parent=1 // pred_fallthru
      _
    %150 = vsyncpa [#allocation3], 1

// kernel: tpu_custom_call.1
$region0: #{tpu_custom_call.1}
  #allocation0 [shape = 'u32[]', space=smem, size = 0x4, offset = 0x4, fixed_abs, tag = 'smem constant byte address 0x4 - core index']
  #allocation1 [shape = 'u32[72,128]{1,0:T(1,128)}', space=vmem, size = 0x9000, scoped, tag = 'internal scratch']
  %s0 = inlined_call_operand.vmem [shape: f32[8,64], index: 0, kind: input, shape index: {}]
  %s1 = inlined_call_operand.vmem [shape: bf16[64,32], index: 1, kind: input, shape index: {}]
  %s2 = inlined_call_operand.vmem [shape: f32[1,32], index: 2, kind: input, shape index: {}]
  %s3 = inlined_call_operand.vmem [shape: bf16[32,64], index: 3, kind: input, shape index: {}]
  %s4 = inlined_call_operand.vmem [shape: f32[1,64], index: 4, kind: input, shape index: {}]
  %s5 = inlined_call_operand.hbm [shape: f32[8,64], index: 5, kind: output, shape index: {}]
  %s6 = sld [smem:[#allocation0]]
  $region30: #{tpu_custom_call.1} parent=0
    _
  %s8 = ssub.s32 1, %s6
  %s9 = scalar_select 0, %s8, %s6
  $region1: #{tpu_custom_call.1} parent=0
    #allocation2 [shape = 'u8[4096]{0}', space=vmem, size = 0x1000, scoped, tag = 'output window, operand 0, single buffered']
    #allocation3 [shape = 's32[1]{0}', space=sflag, size = 0x4, scoped, tag = 'scoped memory for tpu_custom_call.1']
    %10 = vsyncpa [#allocation3], 0
    // Predicated region
    $region2: #{tpu_custom_call.1} parent=1 // pred_check
      _
    $region3: #{tpu_custom_call.1} parent=1 // pred_check_branch
      %12 = sbr.rel (0) target = $region5
    $region4: #{tpu_custom_call.1} parent=1 // pred_region
      _
    $region5: #{tpu_custom_call.1} parent=1 // pred_fallthru
      _
    // Predicated region
    $region6: #{tpu_custom_call.1} parent=1 // pred_check
      _
    $region7: #{tpu_custom_call.1} parent=1 // pred_check_branch
      %14 = sbr.rel (0) target = $region9
    $region8: #{tpu_custom_call.1} parent=1 // pred_region
      _
    $region9: #{tpu_custom_call.1} parent=1 // pred_fallthru
      _
    // Predicated region
    $region10: #{tpu_custom_call.1} parent=1 // pred_check
      _
    $region11: #{tpu_custom_call.1} parent=1 // pred_check_branch
      %16 = sbr.rel (0) target = $region13
    $region12: #{tpu_custom_call.1} parent=1 // pred_region
      _
    $region13: #{tpu_custom_call.1} parent=1 // pred_fallthru
      _
    // Predicated region
    $region14: #{tpu_custom_call.1} parent=1 // pred_check
      _
    $region15: #{tpu_custom_call.1} parent=1 // pred_check_branch
      %18 = sbr.rel (0) target = $region17
    $region16: #{tpu_custom_call.1} parent=1 // pred_region
      _
    $region17: #{tpu_custom_call.1} parent=1 // pred_fallthru
      _
    // Predicated region
    $region18: #{tpu_custom_call.1} parent=1 // pred_check
      _
    $region19: #{tpu_custom_call.1} parent=1 // pred_check_branch
      %20 = sbr.rel (0) target = $region21
    $region20: #{tpu_custom_call.1} parent=1 // pred_region
      _
    $region21: #{tpu_custom_call.1} parent=1 // pred_fallthru
      _
    %v22 = vld [vmem:[%s0] sm:$0xff]
    %v23 = vpack.c.bf16 %v22, %v22
    %v24 = vld [vmem:[%s1] sm:$0xf]
    %v25 = vld [vmem:[%s1 + $0x4] sm:$0xf]
    %v26 = vld [vmem:[%s1 + $0x8] sm:$0xf]
    %v27 = vld [vmem:[%s1 + $0xc] sm:$0xf]
    %v28 = vld [vmem:[%s1 + $0x10] sm:$0xf]
    %v29 = vld [vmem:[%s1 + $0x14] sm:$0xf]
    %v30 = vld [vmem:[%s1 + $0x18] sm:$0xf]
    %v31 = vld [vmem:[%s1 + $0x1c] sm:$0xf]
    %v32 = vld [vmem:[%s2] sm:$0x1]
    %v34 = vperm.slane %v32, 0
    %v44 = vunpack.c.l.b16 %v24
    %v45 = vunpack.c.l.b16 %v25
    %v46 = vunpack.c.l.b16 %v26
    %v47 = vunpack.c.l.b16 %v27
    %v48 = vunpack.c.l.b16 %v28
    %v49 = vunpack.c.l.b16 %v29
    %v50 = vunpack.c.l.b16 %v30
    %v51 = vunpack.c.l.b16 %v31
    %v52 = vpack.c.b16 %v45, %v44
    %v53 = vpack.c.b16 %v47, %v46
    %v54 = vpack.c.b16 %v49, %v48
    %v55 = vpack.c.b16 %v51, %v50
    %vm60 = vcmask 523264
    %v62 = vsel %vm60, %v23, 0
    %64 = vmatpush.bf16.msra.mxu0 0
    %65 = vmatpush.bf16.msra.mxu0 0
    %66 = vmatpush.bf16.msra.mxu0 0
    %67 = vmatpush.bf16.msra.mxu0 0
    %68 = vmatpush.bf16.msra.mxu0 %v55
    %69 = vmatpush.bf16.msra.mxu0 %v54
    %70 = vmatpush.bf16.msra.mxu0 %v53
    %71 = vmatpush.bf16.msra.mxu0 %v52
    %72 = vmatmul.bf16.gmra.mxu0 %v62
    %v73 = vpop.f32.mrf.mxu0
    %v74 = vadd.f32 %v34, %v73
    %v75 = vpop.f32.mrf.mxu0
    %76 = vdwg.mxu0
    %v77 = vxor.u32 %v74, 2147483648
    %v78 = vmul.f32 %v77, 1.442695
    %v79 = vpow.pop %v78
    %v80 = vadd.f32 %v79, 1.0
    %v81 = vrcp.pop %v80
    %v82 = vmul.f32 %v80, %v81
    %v83 = vsub.f32 1.0, %v82
    %v84 = vmul.f32 %v81, %v83
    %v85 = vadd.f32 %v81, %v84
    %vm86 = vweird.f32 %v80
    %vm87 = vweird.f32 %v81
    %vm88 = vmor %vm86, %vm87
    %v89 = vsel %vm88, %v81, %v85
    %v90 = vand.u32 2147483647, %v80
    %vm91 = vcmp.eq.f32.partialorder %v90, 8.507059e+37
    %v92 = vand.u32 %v80, 2147483648
    %v93 = vor.u32 1.1754944e-38, %v92
    %v94 = vsel %vm91, %v93, %v89
    %v95 = vmul.f32 1.0, %v94
    %v96 = vpack.c.bf16 %v95, %v95
    %v97 = vld [vmem:[%s3] sm:$0xf]
    %v98 = vld [vmem:[%s3 + $0x4] sm:$0xf]
    %v99 = vld [vmem:[%s3 + $0x8] sm:$0xf]
    %v100 = vld [vmem:[%s3 + $0xc] sm:$0xf]
    %v101 = vld [vmem:[%s4] sm:$0x1]
    %v103 = vperm.slane %v101, 0
    %v109 = vunpack.c.l.b16 %v97
    %v110 = vunpack.c.l.b16 %v98
    %v111 = vunpack.c.l.b16 %v99
    %v112 = vunpack.c.l.b16 %v100
    %v113 = vpack.c.b16 %v110, %v109
    %v114 = vpack.c.b16 %v112, %v111
    %vm117 = vcmask 261120
    %v119 = vsel %vm117, %v96, 0
    %121 = vmatpush.bf16.msra.mxu0 0
    %122 = vmatpush.bf16.msra.mxu0 0
    %123 = vmatpush.bf16.msra.mxu0 0
    %124 = vmatpush.bf16.msra.mxu0 0
    %125 = vmatpush.bf16.msra.mxu0 0
    %126 = vmatpush.bf16.msra.mxu0 0
    %127 = vmatpush.bf16.msra.mxu0 %v114
    %128 = vmatpush.bf16.msra.mxu0 %v113
    %129 = vmatmul.bf16.gmra.mxu0 %v119
    %v130 = vpop.f32.mrf.mxu0
    %v131 = vadd.f32 %v103, %v130
    %v132 = vpop.f32.mrf.mxu0
    %133 = vdwg.mxu0
    %134 = vst.msk [vmem:[#allocation2] sm:$0xff] %vm60, %v131
    // Predicated region
    $region22: #{tpu_custom_call.1} parent=1 // pred_check
      _
    $region23: #{tpu_custom_call.1} parent=1 // pred_check_branch
      %136 = sbr.rel (0) target = $region25
    $region24: #{tpu_custom_call.1} parent=1 // pred_region
      %138 = vsyncadd [#allocation3], 0
      %s140 = sshll.u32 [#allocation2], 4
      %s141 = int_to_ptr.vmem [resolvable:$true] %s140
      %s142 = sshll.u32 %s5, 4
      %s143 = int_to_ptr.hbm [resolvable:$true] %s142
      %145 = dma.vmem_to_hbm [thread:$0]  %s141, 128, %s143, [#allocation3]
    $region25: #{tpu_custom_call.1} parent=1 // pred_fallthru
      _
    // Predicated region
    $region26: #{tpu_custom_call.1} parent=1 // pred_check
      _
    $region27: #{tpu_custom_call.1} parent=1 // pred_check_branch
      %147 = sbr.rel (0) target = $region29
    $region28: #{tpu_custom_call.1} parent=1 // pred_region
      %149 = dma.done [#allocation3], 128
    $region29: #{tpu_custom_call.1} parent=1 // pred_fallthru
      _
    %150 = vsyncpa [#allocation3], 1

</llo_original>
